<compile_context>
chip_gen: v7x
topology: tpu7x:2x2x1
jax: 0.10.0
libtpu: 0.0.40
codegen_flags: <defaults>
</compile_context>

<pallas_src>
import functools

import numpy as np
import jax
import jax.numpy as jnp
from jax.experimental import pallas as pl
from jax.experimental.pallas import tpu as pltpu

_SQRT2 = float(np.sqrt(2.0))
_LRELU_SLOPE = 0.2


def _round_up(v, m):
    return ((v + m - 1) // m) * m


# ---------------------------------------------------------------------------
# Parameter packing (done ONCE at init, not per forward call)
# ---------------------------------------------------------------------------

def pack_fc_params(weight, bias, *, lr_multiplier=1.0,
                   matmul_dtype=jnp.bfloat16):
    """Pre-pack FullyConnectedLayer parameters.

    weight: [out_f, in_f] (PyTorch layout), bias: [out_f] or None.
    Folds weight_gain = lr_multiplier/sqrt(in_f) and bias_gain = lr_multiplier,
    transposes to [in_f, N_pad] (N zero-padded to a multiple of 128 for
    lane-dense stores) and casts the weight to matmul_dtype (bf16 by default).
    Returns (w_packed [in_f, N_pad], b_packed [1, N_pad] f32, out_features).
    """
    out_f, in_f = weight.shape
    weight_gain = float(lr_multiplier) / float(np.sqrt(in_f))
    bias_gain = float(lr_multiplier)

    n_pad = _round_up(out_f, 128)
    w_scaled = (weight.astype(jnp.float32) * weight_gain).T     # [in_f, out_f]
    if bias is None:
        bias = jnp.zeros((out_f,), jnp.float32)
    b_scaled = bias.astype(jnp.float32) * bias_gain

    if n_pad == out_f:
        w_p = w_scaled.astype(matmul_dtype)
        b_p = b_scaled.reshape(1, out_f)
    else:
        w_p = jnp.zeros((in_f, n_pad), matmul_dtype).at[:, :out_f].set(
            w_scaled.astype(matmul_dtype))
        b_p = jnp.zeros((1, n_pad), jnp.float32).at[0, :out_f].set(b_scaled)
    return w_p, b_p, out_f


def pack_mapping_params(weights, biases, *, lr_multiplier=0.01,
                        matmul_dtype=jnp.bfloat16):
    """Pack a stack of num_layers square FC layers (requires z_dim == w_dim and
    w_dim % 128 == 0, true for the default 512x512 mapping network)."""
    d = weights[0].shape[1]
    assert d % 128 == 0, "fused mapping path needs w_dim % 128 == 0"
    packed_w, packed_b = [], []
    for w, b in zip(weights, biases):
        out_f, in_f = w.shape
        assert out_f == d and in_f == d, "fused mapping path needs z_dim == w_dim"
        wp, bp, _ = pack_fc_params(w, b, lr_multiplier=lr_multiplier,
                                   matmul_dtype=matmul_dtype)
        packed_w.append(wp)
        packed_b.append(bp)
    w_stack = jnp.stack(packed_w)          # [L, D, D]
    b_stack = jnp.stack(packed_b)          # [L, 1, D]
    return w_stack, b_stack


# ---------------------------------------------------------------------------
# FullyConnectedLayer kernels
# ---------------------------------------------------------------------------

def _epilogue(y, activation):
    if activation != "linear":
        pos = jnp.float32(_SQRT2)
        neg = jnp.float32(_LRELU_SLOPE * _SQRT2)
        y = jnp.where(y >= 0, pos * y, neg * y)    # fused lrelu * sqrt(2)
        y = jnp.clip(y, -256.0, 256.0)
    return y


def _fc_kernel_1k(x_ref, w_ref, b_ref, o_ref, *, activation):
    """Single K block: dot straight through the epilogue into o_ref."""
    y = jnp.dot(x_ref[...].astype(w_ref.dtype), w_ref[...],
                preferred_element_type=jnp.float32)
    y = y + b_ref[...]
    o_ref[...] = _epilogue(y, activation).astype(o_ref.dtype)


def _fc_kernel_mk(x_ref, w_ref, b_ref, o_ref, acc_ref, *, activation):
    """Multiple K blocks: f32 VMEM accumulator with pl.when init/finalize."""
    k = pl.program_id(2)

    @pl.when(k == 0)
    def _():
        acc_ref[...] = jnp.zeros_like(acc_ref)

    acc_ref[...] += jnp.dot(x_ref[...].astype(w_ref.dtype), w_ref[...],
                            preferred_element_type=jnp.float32)

    @pl.when(k == pl.num_programs(2) - 1)
    def _():
        y = acc_ref[...] + b_ref[...]
        o_ref[...] = _epilogue(y, activation).astype(o_ref.dtype)


def fc_forward(x, w_packed, b_packed, out_features, *, activation="linear",
               tm=None, tn=None, tk=None):
    """y = act(x @ w_packed + b_packed)[:, :out_features] (gains pre-folded)."""
    M, in_f = x.shape
    k_dim, n_pad = w_packed.shape
    assert k_dim == in_f

    # ---- tile selection (no copies on the aligned fast path) --------------
    if tm is None:
        tm = M if M <= 512 else 256
    if tn is None:
        # 2+ N blocks when out_f >= 512 so v7x's two TensorCores both work.
        tn = 256 if (n_pad % 256 == 0 and n_pad >= 512) else n_pad
    if tk is None:
        # K is only tiled when large and aligned; otherwise one full-dim block.
        tk = 512 if (in_f % 512 == 0 and in_f > 512) else in_f

    if M % tm == 0:
        x_p, m_pad = x, M
    else:
        m_pad = _round_up(M, tm)
        x_p = jnp.zeros((m_pad, in_f), x.dtype).at[:M, :].set(x)

    ni, nj, nk = m_pad // tm, n_pad // tn, in_f // tk
    out_dtype = x.dtype

    # Default scoped VMEM is ample for these tiles on v5e/v6e/v7x (< 3 MiB).
    if nk == 1:
        # Weight-stationary: N blocks outermost, M blocks inner, no K axis.
        out_p = pl.pallas_call(
            functools.partial(_fc_kernel_1k, activation=activation),
            out_shape=jax.ShapeDtypeStruct((m_pad, n_pad), out_dtype),
            grid_spec=pltpu.PrefetchScalarGridSpec(
                num_scalar_prefetch=0,
                grid=(nj, ni),
                in_specs=[
                    pl.BlockSpec((tm, tk), lambda j, i: (i, 0)),   # x
                    pl.BlockSpec((tk, tn), lambda j, i: (0, j)),   # w (stationary per j)
                    pl.BlockSpec((1, tn), lambda j, i: (0, j)),    # bias
                ],
                out_specs=pl.BlockSpec((tm, tn), lambda j, i: (i, j)),
            ),
            compiler_params=pltpu.CompilerParams(
                dimension_semantics=("parallel", "parallel")),
        )(x_p, w_packed, b_packed)
    else:
        out_p = pl.pallas_call(
            functools.partial(_fc_kernel_mk, activation=activation),
            out_shape=jax.ShapeDtypeStruct((m_pad, n_pad), out_dtype),
            grid_spec=pltpu.PrefetchScalarGridSpec(
                num_scalar_prefetch=0,
                grid=(nj, ni, nk),
                in_specs=[
                    pl.BlockSpec((tm, tk), lambda j, i, k: (i, k)),
                    pl.BlockSpec((tk, tn), lambda j, i, k: (k, j)),
                    pl.BlockSpec((1, tn), lambda j, i, k: (0, j)),
                ],
                out_specs=pl.BlockSpec((tm, tn), lambda j, i, k: (i, j)),
                scratch_shapes=[pltpu.VMEM((tm, tn), jnp.float32)],
            ),
            compiler_params=pltpu.CompilerParams(
                dimension_semantics=("parallel", "parallel", "arbitrary")),
        )(x_p, w_packed, b_packed)

    if m_pad != M or n_pad != out_features:
        out_p = out_p[:M, :out_features]
    return out_p


# ---------------------------------------------------------------------------
# Fused MappingNetwork kernel
#   grid axis = layer index; activation stays resident in a VMEM scratch;
#   the layer-indexed weight BlockSpec auto double-buffers the next layer's
#   weight while the current layer's matmul runs.
# ---------------------------------------------------------------------------

def _mapping_kernel(z_ref, w_ref, b_ref, o_ref, act_ref, *, z_dim, num_layers):
    layer = pl.program_id(0)

    @pl.when(layer == 0)
    def _():
        # x = z * rsqrt(mean(z^2) + 1e-8)
        z = z_ref[...].astype(jnp.float32)
        ssq = jnp.sum(z * z, axis=-1, keepdims=True)
        act_ref[...] = z * jax.lax.rsqrt(ssq * (1.0 / z_dim) + 1e-8)

    y = jnp.dot(act_ref[...].astype(w_ref.dtype), w_ref[0],
                preferred_element_type=jnp.float32)
    y = y + b_ref[0]
    act_ref[...] = _epilogue(y, "lrelu")

    @pl.when(layer == num_layers - 1)
    def _():
        o_ref[...] = act_ref[...].astype(o_ref.dtype)


def mapping_network_forward(z, w_stack, b_stack, *, num_ws,
                            w_avg=None, truncation_psi=1.0,
                            truncation_cutoff=None):
    """MappingNetwork.forward: z-normalize, fused FC+lrelu stack, broadcast to
    num_ws, optional truncation lerp."""
    batch, z_dim = z.shape
    num_layers, k_dim, d = w_stack.shape
    assert k_dim == z_dim and d == z_dim and z_dim % 128 == 0

    w_out = pl.pallas_call(
        functools.partial(_mapping_kernel, z_dim=z_dim, num_layers=num_layers),
        out_shape=jax.ShapeDtypeStruct((batch, d), jnp.float32),
        grid_spec=pltpu.PrefetchScalarGridSpec(
            num_scalar_prefetch=0,
            grid=(num_layers,),
            in_specs=[
                pl.BlockSpec((batch, z_dim), lambda l: (0, 0)),    # z (resident)
                pl.BlockSpec((1, z_dim, d), lambda l: (l, 0, 0)),  # layer weight
                pl.BlockSpec((1, 1, d), lambda l: (l, 0, 0)),      # layer bias
            ],
            out_specs=pl.BlockSpec((batch, d), lambda l: (0, 0)),
            scratch_shapes=[pltpu.VMEM((batch, d), jnp.float32)],
        ),
        compiler_params=pltpu.CompilerParams(
            dimension_semantics=("arbitrary",)),   # sequential layer chain
    )(z, w_stack, b_stack)

    ws = jnp.broadcast_to(w_out[:, None, :], (batch, num_ws, d))
    if truncation_psi != 1.0 and w_avg is not None:
        if truncation_cutoff is None:
            truncation_cutoff = num_ws
        trunc = w_avg[None, None, :] + truncation_psi * (
            ws[:, :truncation_cutoff] - w_avg[None, None, :])
        ws = jnp.concatenate([trunc, ws[:, truncation_cutoff:]], axis=1)
    return ws


# ---------------------------------------------------------------------------
# References (host, float64) and checks
# ---------------------------------------------------------------------------

def _ref_fc(x, weight, bias, *, activation, lr_multiplier, matmul_dtype=None):
    x64 = np.asarray(x, np.float64)
    gain = lr_multiplier / np.sqrt(weight.shape[1])
    w_eff = np.asarray(weight, np.float64) * gain
    if matmul_dtype is not None:
        w_eff = np.asarray(jnp.asarray(w_eff, jnp.float32).astype(matmul_dtype)
                           .astype(jnp.float32), np.float64)
        x64 = np.asarray(jnp.asarray(x64, jnp.float32).astype(matmul_dtype)
                         .astype(jnp.float32), np.float64)
    b_eff = np.asarray(bias, np.float64) * lr_multiplier
    y = x64 @ w_eff.T + b_eff[None, :]
    if activation != "linear":
        y = np.where(y >= 0, y, _LRELU_SLOPE * y) * np.sqrt(2.0)
        y = np.clip(y, -256.0, 256.0)
    return y


def _ref_mapping(z, weights, biases, *, lr_multiplier, num_ws, matmul_dtype=None):
    x = np.asarray(z, np.float64)
    x = x * (1.0 / np.sqrt(np.mean(x * x, axis=1, keepdims=True) + 1e-8))
    for w, b in zip(weights, biases):
        x = _ref_fc(x, w, b, activation="lrelu", lr_multiplier=lr_multiplier,
                    matmul_dtype=matmul_dtype)
    return np.repeat(x[:, None, :], num_ws, axis=1)


def _check(out, ref, rtol, atol, name):
    out64 = np.asarray(out, np.float64)
    ok = bool(np.allclose(out64, ref, rtol=rtol, atol=atol))
    if not ok:
        print(f"[{name}] MISMATCH max abs diff:",
              float(np.max(np.abs(out64 - ref))))
    return ok


if __name__ == "__main__":
    key = jax.random.PRNGKey(0)
    keys = jax.random.split(key, 8)
    ok = True

    # --- Test 1: per-layer affine-style FC (SynthesisLayer.affine),
    #     small unaligned out_features, linear + lrelu, f32 operands ---------
    batch, w_dim, in_ch = 4, 128, 36
    x = jax.random.normal(keys[0], (batch, w_dim), jnp.float32)
    w = jax.random.normal(keys[1], (in_ch, w_dim), jnp.float32)
    b = jnp.ones((in_ch,), jnp.float32)                   # bias_init = 1
    for act in ("linear", "lrelu"):
        wp, bp, out_f = pack_fc_params(w, b, lr_multiplier=1.0,
                                       matmul_dtype=jnp.float32)
        out = jax.block_until_ready(
            fc_forward(x, wp, bp, out_f, activation=act))
        ref = _ref_fc(x, w, b, activation=act, lr_multiplier=1.0)
        ok &= _check(out, ref, 1e-4, 1e-4, f"fc-{act}-f32")

    # --- Test 2: mapping-style square layer, bf16 operands (default), tiled K
    #     to exercise the accumulator path --------------------------------
    batch2, dim2, lr = 8, 256, 0.01
    x2 = jax.random.normal(keys[2], (batch2, dim2), jnp.float32)
    w2 = jax.random.normal(keys[3], (dim2, dim2), jnp.float32) / lr
    b2 = jnp.zeros((dim2,), jnp.float32)
    wp2, bp2, out_f2 = pack_fc_params(w2, b2, lr_multiplier=lr)  # bf16 default
    out = jax.block_until_ready(
        fc_forward(x2, wp2, bp2, out_f2, activation="lrelu", tk=128, tn=128))
    ref = _ref_fc(x2, w2, b2, activation="lrelu", lr_multiplier=lr,
                  matmul_dtype=jnp.bfloat16)
    ok &= _check(out, ref, 2e-2, 2e-2, "fc-lrelu-bf16-tiledK")

    # --- Test 3: fused MappingNetwork (z-norm + 2 chained FC+lrelu layers,
    #     bf16 weights resident/double-buffered, activation in VMEM) --------
    num_layers, num_ws = 2, 5
    z = jax.random.normal(keys[4], (batch2, dim2), jnp.float32)
    ws_list, bs_list = [], []
    for i in range(num_layers):
        ws_list.append(jax.random.normal(keys[5 + i], (dim2, dim2),
                                         jnp.float32) / lr)
        bs_list.append(jnp.zeros((dim2,), jnp.float32))
    w_stack, b_stack = pack_mapping_params(ws_list, bs_list, lr_multiplier=lr)
    ws_out = jax.block_until_ready(
        mapping_network_forward(z, w_stack, b_stack, num_ws=num_ws))
    ref_ws = _ref_mapping(z, ws_list, bs_list, lr_multiplier=lr,
                          num_ws=num_ws, matmul_dtype=jnp.bfloat16)
    ok &= _check(ws_out, ref_ws, 2e-2, 2e-2, "fused-mapping-bf16")

    if ok:
        print("KERNEL_OK")
</pallas_src>

<mosaic_0001>
module attributes {stable_mosaic.version = 11 : i64} {
  func.func @_fc_kernel_1k(%arg0: i32, %arg1: i32, %arg2: memref<4x128xf32, #tpu.memory_space<vmem>>, %arg3: memref<128x128xf32, #tpu.memory_space<vmem>>, %arg4: memref<1x128xf32, #tpu.memory_space<vmem>>, %arg5: memref<4x128xf32, #tpu.memory_space<vmem>>) attributes {dimension_semantics = [#tpu.dimension_semantics<parallel>, #tpu.dimension_semantics<parallel>], iteration_bounds = array<i64: 1, 1>, scalar_prefetch = 0 : i64, scratch_operands = 0 : i64, tpu.core_type = #tpu.core_type<tc>, window_params = [{transform_indices = @transform_0, window_bounds = array<i64: 4, 128>}, {transform_indices = @transform_1, window_bounds = array<i64: 128, 128>}, {transform_indices = @transform_2, window_bounds = array<i64: 1, 128>}, {transform_indices = @transform_3, window_bounds = array<i64: 4, 128>}]} {
    %c0 = arith.constant 0 : index
    %c0_0 = arith.constant 0 : index
    %0 = vector.load %arg2[%c0, %c0_0] : memref<4x128xf32, #tpu.memory_space<vmem>>, vector<4x128xf32>
    %c0_1 = arith.constant 0 : index
    %c0_2 = arith.constant 0 : index
    %1 = vector.load %arg3[%c0_1, %c0_2] : memref<128x128xf32, #tpu.memory_space<vmem>>, vector<128x128xf32>
    %cst = arith.constant dense<0.000000e+00> : vector<4x128xf32>
    %2 = tpu.matmul %0, %1, %cst {dimension_numbers = #tpu.dot_dimension_numbers<[1], [0], [0], [1], [0, 0, 1, 1], [], []>} : vector<4x128xf32>, vector<128x128xf32>, vector<4x128xf32> -> vector<4x128xf32>
    %c0_3 = arith.constant 0 : index
    %c0_4 = arith.constant 0 : index
    %3 = vector.load %arg4[%c0_3, %c0_4] : memref<1x128xf32, #tpu.memory_space<vmem>>, vector<1x128xf32>
    %4 = vector.broadcast %3 : vector<1x128xf32> to vector<4x128xf32>
    %5 = arith.addf %2, %4 : vector<4x128xf32>
    %c0_5 = arith.constant 0 : index
    %c0_6 = arith.constant 0 : index
    %6 = vector.load %arg5[%c0_5, %c0_6] : memref<4x128xf32, #tpu.memory_space<vmem>>, vector<4x128xf32>
    tpu.vector_store %arg5[%c0_5, %c0_6], %5 {strides = array<i32>} : memref<4x128xf32, #tpu.memory_space<vmem>>, vector<4x128xf32>,
    return
  }
  func.func @transform_0(%arg0: i32, %arg1: i32) -> (i32, i32) {
    %c0_i32 = arith.constant 0 : i32
    %c0_i32_0 = arith.constant 0 : i32
    return %arg1, %c0_i32 : i32, i32
  }
  func.func @transform_1(%arg0: i32, %arg1: i32) -> (i32, i32) {
    %c0_i32 = arith.constant 0 : i32
    %c0_i32_0 = arith.constant 0 : i32
    return %c0_i32, %arg0 : i32, i32
  }
  func.func @transform_2(%arg0: i32, %arg1: i32) -> (i32, i32) {
    %c0_i32 = arith.constant 0 : i32
    %c0_i32_0 = arith.constant 0 : i32
    return %c0_i32, %arg0 : i32, i32
  }
  func.func @transform_3(%arg0: i32, %arg1: i32) -> (i32, i32) {
    %c0_i32 = arith.constant 0 : i32
    return %arg1, %arg0 : i32, i32
  }
}

</mosaic_0001>

<llo_original>
// kernel: tpu_custom_call.1
$region0: #{tpu_custom_call.1}
  #allocation0 [shape = 'u32[]', space=smem, size = 0x4, offset = 0x4, fixed_abs, tag = 'smem constant byte address 0x4 - core index']
  #allocation1 [shape = 'u32[144,128]{1,0:T(1,128)}', space=vmem, size = 0x12000, scoped, tag = 'internal scratch']
  %s0 = inlined_call_operand.hbm [shape: f32[4,128], index: 0, kind: input, shape index: {}]
  %s1 = inlined_call_operand.hbm [shape: f32[128,128], index: 1, kind: input, shape index: {}]
  %s2 = inlined_call_operand.vmem [shape: f32[1,128], index: 2, kind: input, shape index: {}]
  %s3 = inlined_call_operand.hbm [shape: f32[4,128], index: 3, kind: output, shape index: {}]
  %s4 = sld [smem:[#allocation0]]
  $region30: #{tpu_custom_call.1} parent=0
    _
  %s6 = ssub.s32 1, %s4
  %s7 = scalar_select 0, %s6, %s4
  $region1: #{tpu_custom_call.1} parent=0
    #allocation2 [shape = 'u8[2048]{0}', space=vmem, size = 0x800, scoped, tag = 'input window, operand 0, single buffered']
    #allocation3 [shape = 's32[1]{0}', space=sflag, size = 0x4, scoped, tag = 'scoped memory for tpu_custom_call.1']
    #allocation4 [shape = 's32[1]{0}', space=sflag, size = 0x4, scoped, tag = 'scoped memory for tpu_custom_call.1']
    #allocation5 [shape = 'u8[65536]{0}', space=vmem, size = 0x10000, scoped, tag = 'input window, operand 1, single buffered']
    #allocation6 [shape = 's32[1]{0}', space=sflag, size = 0x4, scoped, tag = 'scoped memory for tpu_custom_call.1']
    #allocation7 [shape = 'u8[2048]{0}', space=vmem, size = 0x800, scoped, tag = 'output window, operand 0, single buffered']
    %8 = vsyncpa [#allocation3], 0
    %9 = vsyncpa [#allocation6], 0
    %10 = vsyncpa [#allocation4], 0
    // Predicated region
    $region2: #{tpu_custom_call.1} parent=1 // pred_check
      _
    $region3: #{tpu_custom_call.1} parent=1 // pred_check_branch
      %12 = sbr.rel (0) target = $region5
    $region4: #{tpu_custom_call.1} parent=1 // pred_region
      %s14 = ssub.s32 64, 64
      %15 = vsyncadd [#allocation3], %s14
      %s17 = sshll.u32 [#allocation2], 4
      %s18 = int_to_ptr.vmem [resolvable:$true] %s17
      %20 = dma.hbm_to_vmem [thread:$0]  %s0, 64, %s18, [#allocation3]
    $region5: #{tpu_custom_call.1} parent=1 // pred_fallthru
      _
    // Predicated region
    $region6: #{tpu_custom_call.1} parent=1 // pred_check
      _
    $region7: #{tpu_custom_call.1} parent=1 // pred_check_branch
      %22 = sbr.rel (0) target = $region9
    $region8: #{tpu_custom_call.1} parent=1 // pred_region
      %s24 = ssub.s32 2048, 2048
      %25 = vsyncadd [#allocation6], %s24
      %s26 = sshll.u32 [#allocation5], 4
      %s27 = int_to_ptr.vmem [resolvable:$true] %s26
      %32 = dma.hbm_to_vmem [thread:$0]  %s1, 2048, %s27, [#allocation6], 128, 128, 8
    $region9: #{tpu_custom_call.1} parent=1 // pred_fallthru
      _
    // Predicated region
    $region10: #{tpu_custom_call.1} parent=1 // pred_check
      _
    $region11: #{tpu_custom_call.1} parent=1 // pred_check_branch
      %34 = sbr.rel (0) target = $region13
    $region12: #{tpu_custom_call.1} parent=1 // pred_region
      _
    $region13: #{tpu_custom_call.1} parent=1 // pred_fallthru
      _
    // Predicated region
    $region14: #{tpu_custom_call.1} parent=1 // pred_check
      _
    $region15: #{tpu_custom_call.1} parent=1 // pred_check_branch
      %36 = sbr.rel (0) target = $region17
    $region16: #{tpu_custom_call.1} parent=1 // pred_region
      %37 = dma.done [#allocation3], 64
    $region17: #{tpu_custom_call.1} parent=1 // pred_fallthru
      _
    // Predicated region
    $region18: #{tpu_custom_call.1} parent=1 // pred_check
      _
    $region19: #{tpu_custom_call.1} parent=1 // pred_check_branch
      %39 = sbr.rel (0) target = $region21
    $region20: #{tpu_custom_call.1} parent=1 // pred_region
      %40 = dma.done [#allocation6], 2048
    $region21: #{tpu_custom_call.1} parent=1 // pred_fallthru
      _
    %v41 = vld [vmem:[#allocation2] sm:$0xf]
    %v42 = vld [vmem:[#allocation5] sm:$0xff]
    %v43 = vld [vmem:[#allocation5 + $0x8] sm:$0xff]
    %v44 = vld [vmem:[#allocation5 + $0x10] sm:$0xff]
    %v45 = vld [vmem:[#allocation5 + $0x18] sm:$0xff]
    %v46 = vld [vmem:[#allocation5 + $0x20] sm:$0xff]
    %v47 = vld [vmem:[#allocation5 + $0x28] sm:$0xff]
    %v48 = vld [vmem:[#allocation5 + $0x30] sm:$0xff]
    %v49 = vld [vmem:[#allocation5 + $0x38] sm:$0xff]
    %v50 = vld [vmem:[#allocation5 + $0x40] sm:$0xff]
    %v51 = vld [vmem:[#allocation5 + $0x48] sm:$0xff]
    %v52 = vld [vmem:[#allocation5 + $0x50] sm:$0xff]
    %v53 = vld [vmem:[#allocation5 + $0x58] sm:$0xff]
    %v54 = vld [vmem:[#allocation5 + $0x60] sm:$0xff]
    %v55 = vld [vmem:[#allocation5 + $0x68] sm:$0xff]
    %v56 = vld [vmem:[#allocation5 + $0x70] sm:$0xff]
    %v57 = vld [vmem:[#allocation5 + $0x78] sm:$0xff]
    %v58 = vld [vmem:[%s2] sm:$0x1]
    %v60 = vlaneseq
    %v61 = vshrl.u32 %v60, 7
    %v62 = vsub.s32 0, %v61
    %v63 = vrot.slane %v58, %v62
    %65 = vmatprep.subr.mxu0 0.0
    %66 = vmatpush1.msra.mxu0 %v42
    %67 = vmatprep.subr.mxu0 0.0
    %68 = vmatpush1.msra.mxu0 %v43
    %69 = vmatprep.subr.mxu0 0.0
    %70 = vmatpush1.msra.mxu0 %v44
    %71 = vmatprep.subr.mxu0 0.0
    %72 = vmatpush1.msra.mxu0 %v45
    %73 = vmatprep.subr.mxu0 0.0
    %74 = vmatpush1.msra.mxu0 %v46
    %75 = vmatprep.subr.mxu0 0.0
    %76 = vmatpush1.msra.mxu0 %v47
    %77 = vmatprep.subr.mxu0 0.0
    %78 = vmatpush1.msra.mxu0 %v48
    %79 = vmatprep.subr.mxu0 0.0
    %80 = vmatpush1.msra.mxu0 %v49
    %81 = vmatprep.subr.mxu0 0.0
    %82 = vmatpush1.msra.mxu0 %v50
    %83 = vmatprep.subr.mxu0 0.0
    %84 = vmatpush1.msra.mxu0 %v51
    %85 = vmatprep.subr.mxu0 0.0
    %86 = vmatpush1.msra.mxu0 %v52
    %87 = vmatprep.subr.mxu0 0.0
    %88 = vmatpush1.msra.mxu0 %v53
    %89 = vmatprep.subr.mxu0 0.0
    %90 = vmatpush1.msra.mxu0 %v54
    %91 = vmatprep.subr.mxu0 0.0
    %92 = vmatpush1.msra.mxu0 %v55
    %93 = vmatprep.subr.mxu0 0.0
    %94 = vmatpush1.msra.mxu0 %v56
    %95 = vmatprep.subr.mxu0 0.0
    %96 = vmatpush1.msra.mxu0 %v57
    %97 = vmatprep.subr.mxu0 0.0
    %98 = vmatpush1.msra.mxu0 0.0
    %99 = vmatprep.subr.mxu0 0.0
    %100 = vmatpush1.msra.mxu0 0.0
    %101 = vmatprep.subr.mxu0 0.0
    %102 = vmatpush1.msra.mxu0 0.0
    %103 = vmatprep.subr.mxu0 0.0
    %104 = vmatpush1.msra.mxu0 0.0
    %105 = vmatprep.subr.mxu0 0.0
    %106 = vmatpush1.msra.mxu0 0.0
    %107 = vmatprep.subr.mxu0 0.0
    %108 = vmatpush1.msra.mxu0 0.0
    %109 = vmatprep.subr.mxu0 0.0
    %110 = vmatpush1.msra.mxu0 0.0
    %111 = vmatprep.subr.mxu0 0.0
    %112 = vmatpush1.msra.mxu0 0.0
    %113 = vmatprep.subr.mxu0 0.0
    %114 = vmatpush1.msra.mxu0 0.0
    %115 = vmatprep.subr.mxu0 0.0
    %116 = vmatpush1.msra.mxu0 0.0
    %117 = vmatprep.subr.mxu0 0.0
    %118 = vmatpush1.msra.mxu0 0.0
    %119 = vmatprep.subr.mxu0 0.0
    %120 = vmatpush1.msra.mxu0 0.0
    %121 = vmatprep.subr.mxu0 0.0
    %122 = vmatpush1.msra.mxu0 0.0
    %123 = vmatprep.subr.mxu0 0.0
    %124 = vmatpush1.msra.mxu0 0.0
    %125 = vmatprep.subr.mxu0 0.0
    %126 = vmatpush1.msra.mxu0 0.0
    %127 = vmatprep.subr.mxu0 0.0
    %128 = vmatpush1.msra.mxu0 0.0
    %129 = vmatprep.mubr.f32.mxu0 0.0
    %130 = vmatmul.mubr.f32.gmra.mrb[0].mxu0 %v41
    %v131 = vpop.f32.mrb[0].mxu0
    %v132 = vadd.f32 %v63, %v131
    %v133 = vpop.f32.mrb[0].mxu0
    %134 = vdwg.mxu0
    %135 = vst [vmem:[#allocation7] sm:$0xf] %v132
    // Predicated region
    $region22: #{tpu_custom_call.1} parent=1 // pred_check
      _
    $region23: #{tpu_custom_call.1} parent=1 // pred_check_branch
      %137 = sbr.rel (0) target = $region25
    $region24: #{tpu_custom_call.1} parent=1 // pred_region
      %s139 = ssub.s32 64, 64
      %140 = vsyncadd [#allocation4], %s139
      %s142 = sshll.u32 [#allocation7], 4
      %s143 = int_to_ptr.vmem [resolvable:$true] %s142
      %145 = dma.vmem_to_hbm [thread:$0]  %s143, 64, %s3, [#allocation4]
    $region25: #{tpu_custom_call.1} parent=1 // pred_fallthru
      _
    // Predicated region
    $region26: #{tpu_custom_call.1} parent=1 // pred_check
      _
    $region27: #{tpu_custom_call.1} parent=1 // pred_check_branch
      %147 = sbr.rel (0) target = $region29
    $region28: #{tpu_custom_call.1} parent=1 // pred_region
      %148 = dma.done [#allocation4], 64
    $region29: #{tpu_custom_call.1} parent=1 // pred_fallthru
      _
    %149 = vsyncpa [#allocation3], 1
    %150 = vsyncpa [#allocation6], 1
    %151 = vsyncpa [#allocation4], 1

</llo_original>
